<compile_context>
chip_gen: v7x
topology: tpu7x:2x2x1
jax: 0.10.0
libtpu: 0.0.40
codegen_flags: <defaults>
</compile_context>

<pallas_src>
import functools

import jax
import jax.numpy as jnp
from jax.experimental import pallas as pl
from jax.experimental.pallas import tpu as pltpu


# ---------------------------------------------------------------------------
# helpers
# ---------------------------------------------------------------------------

def _round_up(x, m):
    return ((x + m - 1) // m) * m


def _round_down(x, m):
    return (x // m) * m


def _vmem_capacity_bytes():
    try:
        return int(pltpu.get_tpu_info().vmem_capacity_bytes)
    except Exception:
        return 64 << 20  # conservative default (v7x per-TensorCore VMEM)


def _pick_row_tile(n_rows, bytes_per_row, tile_budget):
    """Rows per block: multiple of 8, fits the per-output tile budget, and
    leaves >= 2 grid steps so a 'parallel' axis can feed both v7x cores."""
    if n_rows <= 8:
        return n_rows  # full-extent block is always legal
    t = max(8, _round_down(tile_budget // max(1, bytes_per_row), 8))
    t = min(t, _round_up(-(-n_rows // 2), 8))  # >= 2 grid steps
    return max(8, t)


def _exact_lane_expand(x, sel_bf16):
    """Exact x @ sel for a 0/1 selection matrix, via the 3-way bf16 split
    (f32 mantissa = 3 exact bf16 pieces).  Each MXU product is piece * 1.0, so
    the f32 accumulation reconstructs x exactly regardless of MXU precision."""
    x = x.astype(jnp.float32)
    x1 = x.astype(jnp.bfloat16)
    r1 = x - x1.astype(jnp.float32)
    x2 = r1.astype(jnp.bfloat16)
    x3 = (r1 - x2.astype(jnp.float32)).astype(jnp.bfloat16)
    d1 = jnp.dot(x1, sel_bf16, preferred_element_type=jnp.float32)
    d2 = jnp.dot(x2, sel_bf16, preferred_element_type=jnp.float32)
    d3 = jnp.dot(x3, sel_bf16, preferred_element_type=jnp.float32)
    return d1 + (d2 + d3)  # sum order keeps the reconstruction exact


# ---------------------------------------------------------------------------
# kernels
# ---------------------------------------------------------------------------

def _even_grid_slab_kernel(unit_ref, params_ref, abs_ref, rel_ref, *, n_grid):
    # Lane-dense path (n_grid < 128, 128 % n_grid == 0).
    # unit_ref/params_ref: (tile_m, reps); abs_ref/rel_ref: (tile_m, 128),
    # where slab[m, l] corresponds to logical row m*reps + l//n_grid,
    # column l % n_grid.
    tm, lanes = rel_ref.shape              # lanes == 128
    reps = lanes // n_grid                 # logical rows packed per slab row
    shift = n_grid.bit_length() - 1        # n_grid is a power of two here

    lane = jax.lax.broadcasted_iota(jnp.int32, (tm, lanes), 1)
    # even_scale[j] = j + 1 with j = lane % n_grid (exact: small integers).
    scale = (jnp.bitwise_and(lane, n_grid - 1) + 1).astype(jnp.float32)

    # 0/1 selection matrix: sel[r, l] = 1 iff lane l belongs to packed row r.
    lane_r = jax.lax.broadcasted_iota(jnp.int32, (reps, lanes), 1)
    row_r = jax.lax.broadcasted_iota(jnp.int32, (reps, lanes), 0)
    sel = (jnp.right_shift(lane_r, shift) == row_r)
    sel = sel.astype(jnp.float32).astype(jnp.bfloat16)

    u_x = _exact_lane_expand(unit_ref[...], sel)      # (tm, 128), exact
    p_x = _exact_lane_expand(params_ref[...], sel)    # (tm, 128), exact

    rel = u_x * scale
    rel_ref[...] = rel
    abs_ref[...] = p_x + rel


def _even_grid_row_kernel(unit_ref, params_ref, abs_ref, rel_ref):
    # General path: unit_ref/params_ref (tile_n, 1); outputs (tile_n, tile_g).
    tn, tg = rel_ref.shape
    j = pl.program_id(1)
    # even_scale[col] = global_col + 1; exact in f32 for n_grid < 2**24.
    base = (j * tg + 1).astype(jnp.float32)
    scale = jax.lax.broadcasted_iota(jnp.float32, (tn, tg), 1) + base
    rel = unit_ref[...] * scale            # (tile_n,1) broadcast over lanes
    rel_ref[...] = rel
    abs_ref[...] = params_ref[...] + rel


# ---------------------------------------------------------------------------
# wrapper
# ---------------------------------------------------------------------------

def _even_grid_jnp(unit, params, n_grid):
    scale = jnp.arange(1, n_grid + 1, dtype=jnp.float32)[None, :]
    rel = unit * scale
    return params + rel, rel


@functools.partial(jax.jit, static_argnames=("n_grid", "use_pallas"))
def even_linear_grid_maker(unit, params, n_grid, use_pallas=None):
    """unit, params: (N, 1) float32 -> (grid_abs, grid_rel): (N, n_grid)."""
    unit = jnp.asarray(unit, jnp.float32)
    params = jnp.asarray(params, jnp.float32)
    assert unit.ndim == 2 and unit.shape[1] == 1
    assert params.shape == unit.shape
    n_rows = unit.shape[0]

    out_bytes = 2 * n_rows * n_grid * 4
    if use_pallas is None:
        # pallas_call fixed overhead dominates tiny problems: fused jnp wins.
        use_pallas = out_bytes >= (256 << 10)
    if not use_pallas:
        return _even_grid_jnp(unit, params, n_grid)

    vmem_cap = _vmem_capacity_bytes()
    # ~48 MiB on v7x (64 MiB physical), 64 MiB on v5e/v6e (128 MiB physical).
    vmem_limit = min((vmem_cap * 3) // 4, 64 << 20)
    # Per-output tile budget: 2 outputs x 2 pipeline buffers must fit with room
    # for inputs + compiler scratch (=> ~6-8 MiB tiles, 24-32 MiB pipelined).
    tile_budget = max(1 << 20, min(8 << 20, vmem_limit // 8))

    cost = pl.CostEstimate(
        flops=3 * n_rows * n_grid,
        transcendentals=0,
        bytes_accessed=out_bytes + 2 * 4 * n_rows,
    )

    reps = 128 // n_grid if (n_grid < 128 and 128 % n_grid == 0) else 0
    if reps and n_rows % reps == 0:
        # ---------------- lane-dense slab path ----------------
        m_rows = n_rows // reps
        unit_s = unit.reshape(m_rows, reps)      # cheap: N*4 bytes
        params_s = params.reshape(m_rows, reps)
        tile_m = _pick_row_tile(m_rows, 128 * 4, tile_budget)
        grid = (pl.cdiv(m_rows, tile_m),)

        abs_s, rel_s = pl.pallas_call(
            functools.partial(_even_grid_slab_kernel, n_grid=n_grid),
            out_shape=(
                jax.ShapeDtypeStruct((m_rows, 128), jnp.float32),  # grid_abs
                jax.ShapeDtypeStruct((m_rows, 128), jnp.float32),  # grid_rel
            ),
            grid=grid,
            in_specs=[
                pl.BlockSpec((tile_m, reps), lambda i: (i, 0)),
                pl.BlockSpec((tile_m, reps), lambda i: (i, 0)),
            ],
            out_specs=(
                pl.BlockSpec((tile_m, 128), lambda i: (i, 0)),
                pl.BlockSpec((tile_m, 128), lambda i: (i, 0)),
            ),
            compiler_params=pltpu.CompilerParams(
                dimension_semantics=("parallel",),
                vmem_limit_bytes=vmem_limit,
            ),
            cost_estimate=cost,
        )(unit_s, params_s)
        # Layout plumbing back to the module's logical shape.
        return abs_s.reshape(n_rows, n_grid), rel_s.reshape(n_rows, n_grid)

    # ---------------- general row path ----------------
    row_bytes = n_grid * 4
    if row_bytes * 8 <= tile_budget:
        tile_g = n_grid                               # full lane extent
    else:
        # Huge n_grid: tile the lane axis too (multiple of 128).
        tile_g = max(128, _round_down(tile_budget // (8 * 4), 128))
    tile_n = _pick_row_tile(n_rows, tile_g * 4, tile_budget)
    grid = (pl.cdiv(n_rows, tile_n), pl.cdiv(n_grid, tile_g))

    grid_abs, grid_rel = pl.pallas_call(
        _even_grid_row_kernel,
        out_shape=(
            jax.ShapeDtypeStruct((n_rows, n_grid), jnp.float32),  # grid_abs
            jax.ShapeDtypeStruct((n_rows, n_grid), jnp.float32),  # grid_rel
        ),
        grid=grid,
        in_specs=[
            pl.BlockSpec((tile_n, 1), lambda i, j: (i, 0)),
            pl.BlockSpec((tile_n, 1), lambda i, j: (i, 0)),
        ],
        out_specs=(
            pl.BlockSpec((tile_n, tile_g), lambda i, j: (i, j)),
            pl.BlockSpec((tile_n, tile_g), lambda i, j: (i, j)),
        ),
        compiler_params=pltpu.CompilerParams(
            dimension_semantics=("parallel", "parallel"),
            vmem_limit_bytes=vmem_limit,
        ),
        cost_estimate=cost,
    )(unit, params)
    return grid_abs, grid_rel


# ---------------------------------------------------------------------------
# demo / self-test
# ---------------------------------------------------------------------------

if __name__ == "__main__":
    def reference(unit, params, n_grid):
        scale = jnp.arange(1, n_grid + 1, dtype=jnp.float32)[None, :]
        rel = unit * scale
        return params + rel, rel

    def check(n_rows, n_grid, use_pallas, seed):
        k_u, k_p = jax.random.split(jax.random.PRNGKey(seed))
        unit = jax.random.normal(k_u, (n_rows, 1), dtype=jnp.float32)
        params = jax.random.normal(k_p, (n_rows, 1), dtype=jnp.float32)
        got_abs, got_rel = even_linear_grid_maker(
            unit, params, n_grid, use_pallas=use_pallas)
        jax.block_until_ready((got_abs, got_rel))
        ref_abs, ref_rel = reference(unit, params, n_grid)
        assert got_abs.shape == (n_rows, n_grid)
        assert got_rel.shape == (n_rows, n_grid)
        assert jnp.allclose(got_rel, ref_rel, atol=1e-6, rtol=1e-6)
        assert jnp.allclose(got_abs, ref_abs, atol=1e-6, rtol=1e-6)

    # Lane-dense slab path (n_grid = 16 < 128), single tile.
    check(64, 16, True, 0)
    # Lane-dense slab path, multi-tile with ragged last row-block (no padding).
    check(304, 16, True, 1)
    # General row path: n_grid does not divide 128, ragged N (masked edge).
    check(300, 48, True, 2)
    # Tiny problem: auto heuristic takes the fused-jnp fallback.
    check(8, 16, None, 3)

    print("KERNEL_OK")
</pallas_src>

<mosaic_0001>
module attributes {stable_mosaic.version = 11 : i64} {
  func.func @_even_grid_slab_kernel(%arg0: i32, %arg1: memref<8x8xf32, #tpu.memory_space<vmem>>, %arg2: memref<8x8xf32, #tpu.memory_space<vmem>>, %arg3: memref<8x128xf32, #tpu.memory_space<vmem>>, %arg4: memref<8x128xf32, #tpu.memory_space<vmem>>) attributes {dimension_semantics = [#tpu.dimension_semantics<parallel>], iteration_bounds = array<i64: 1>, scalar_prefetch = 0 : i64, scratch_operands = 0 : i64, tpu.core_type = #tpu.core_type<tc>, window_params = [{transform_indices = @transform_0, window_bounds = array<i64: 8, 8>}, {transform_indices = @transform_1, window_bounds = array<i64: 8, 8>}, {transform_indices = @transform_2, window_bounds = array<i64: 8, 128>}, {transform_indices = @transform_3, window_bounds = array<i64: 8, 128>}]} {
    %0 = tpu.iota {dimensions = array<i32: 1>} : vector<8x128xi32>
    %c15_i32 = arith.constant 15 : i32
    %1 = vector.broadcast %c15_i32 : i32 to vector<8x128xi32>
    %2 = arith.andi %0, %1 : vector<8x128xi32>
    %c1_i32 = arith.constant 1 : i32
    %3 = vector.broadcast %c1_i32 : i32 to vector<8x128xi32>
    %4 = arith.addi %2, %3 : vector<8x128xi32>
    %5 = arith.sitofp %4 : vector<8x128xi32> to vector<8x128xf32>
    %6 = tpu.iota {dimensions = array<i32: 1>} : vector<8x128xi32>
    %7 = tpu.iota {dimensions = array<i32: 0>} : vector<8x128xi32>
    %c4_i32 = arith.constant 4 : i32
    %8 = vector.broadcast %c4_i32 : i32 to vector<8x128xi32>
    %9 = arith.shrsi %6, %8 : vector<8x128xi32>
    %10 = arith.cmpi eq, %9, %7 : vector<8x128xi32>
    %11 = arith.extui %10 : vector<8x128xi1> to vector<8x128xi32>
    %12 = arith.sitofp %11 : vector<8x128xi32> to vector<8x128xf32>
    %13 = arith.truncf %12 : vector<8x128xf32> to vector<8x128xbf16>
    %c0 = arith.constant 0 : index
    %c0_0 = arith.constant 0 : index
    %14 = vector.load %arg1[%c0, %c0_0] : memref<8x8xf32, #tpu.memory_space<vmem>>, vector<8x8xf32>
    %15 = arith.truncf %14 : vector<8x8xf32> to vector<8x8xbf16>
    %16 = arith.extf %15 : vector<8x8xbf16> to vector<8x8xf32>
    %17 = arith.subf %14, %16 : vector<8x8xf32>
    %18 = arith.truncf %17 : vector<8x8xf32> to vector<8x8xbf16>
    %19 = arith.extf %18 : vector<8x8xbf16> to vector<8x8xf32>
    %20 = arith.subf %17, %19 : vector<8x8xf32>
    %21 = arith.truncf %20 : vector<8x8xf32> to vector<8x8xbf16>
    %cst = arith.constant dense<0.000000e+00> : vector<8x128xf32>
    %22 = tpu.matmul %15, %13, %cst {dimension_numbers = #tpu.dot_dimension_numbers<[1], [0], [0], [1], [0, 0, 1, 1], [], []>} : vector<8x8xbf16>, vector<8x128xbf16>, vector<8x128xf32> -> vector<8x128xf32>
    %cst_1 = arith.constant dense<0.000000e+00> : vector<8x128xf32>
    %23 = tpu.matmul %18, %13, %cst_1 {dimension_numbers = #tpu.dot_dimension_numbers<[1], [0], [0], [1], [0, 0, 1, 1], [], []>} : vector<8x8xbf16>, vector<8x128xbf16>, vector<8x128xf32> -> vector<8x128xf32>
    %cst_2 = arith.constant dense<0.000000e+00> : vector<8x128xf32>
    %24 = tpu.matmul %21, %13, %cst_2 {dimension_numbers = #tpu.dot_dimension_numbers<[1], [0], [0], [1], [0, 0, 1, 1], [], []>} : vector<8x8xbf16>, vector<8x128xbf16>, vector<8x128xf32> -> vector<8x128xf32>
    %25 = arith.addf %23, %24 : vector<8x128xf32>
    %26 = arith.addf %22, %25 : vector<8x128xf32>
    %c0_3 = arith.constant 0 : index
    %c0_4 = arith.constant 0 : index
    %27 = vector.load %arg2[%c0_3, %c0_4] : memref<8x8xf32, #tpu.memory_space<vmem>>, vector<8x8xf32>
    %28 = arith.truncf %27 : vector<8x8xf32> to vector<8x8xbf16>
    %29 = arith.extf %28 : vector<8x8xbf16> to vector<8x8xf32>
    %30 = arith.subf %27, %29 : vector<8x8xf32>
    %31 = arith.truncf %30 : vector<8x8xf32> to vector<8x8xbf16>
    %32 = arith.extf %31 : vector<8x8xbf16> to vector<8x8xf32>
    %33 = arith.subf %30, %32 : vector<8x8xf32>
    %34 = arith.truncf %33 : vector<8x8xf32> to vector<8x8xbf16>
    %cst_5 = arith.constant dense<0.000000e+00> : vector<8x128xf32>
    %35 = tpu.matmul %28, %13, %cst_5 {dimension_numbers = #tpu.dot_dimension_numbers<[1], [0], [0], [1], [0, 0, 1, 1], [], []>} : vector<8x8xbf16>, vector<8x128xbf16>, vector<8x128xf32> -> vector<8x128xf32>
    %cst_6 = arith.constant dense<0.000000e+00> : vector<8x128xf32>
    %36 = tpu.matmul %31, %13, %cst_6 {dimension_numbers = #tpu.dot_dimension_numbers<[1], [0], [0], [1], [0, 0, 1, 1], [], []>} : vector<8x8xbf16>, vector<8x128xbf16>, vector<8x128xf32> -> vector<8x128xf32>
    %cst_7 = arith.constant dense<0.000000e+00> : vector<8x128xf32>
    %37 = tpu.matmul %34, %13, %cst_7 {dimension_numbers = #tpu.dot_dimension_numbers<[1], [0], [0], [1], [0, 0, 1, 1], [], []>} : vector<8x8xbf16>, vector<8x128xbf16>, vector<8x128xf32> -> vector<8x128xf32>
    %38 = arith.addf %36, %37 : vector<8x128xf32>
    %39 = arith.addf %35, %38 : vector<8x128xf32>
    %40 = arith.mulf %26, %5 : vector<8x128xf32>
    %c0_8 = arith.constant 0 : index
    %c0_9 = arith.constant 0 : index
    %41 = vector.load %arg4[%c0_8, %c0_9] : memref<8x128xf32, #tpu.memory_space<vmem>>, vector<8x128xf32>
    tpu.vector_store %arg4[%c0_8, %c0_9], %40 {strides = array<i32>} : memref<8x128xf32, #tpu.memory_space<vmem>>, vector<8x128xf32>,
    %42 = arith.addf %39, %40 : vector<8x128xf32>
    %c0_10 = arith.constant 0 : index
    %c0_11 = arith.constant 0 : index
    %43 = vector.load %arg3[%c0_10, %c0_11] : memref<8x128xf32, #tpu.memory_space<vmem>>, vector<8x128xf32>
    tpu.vector_store %arg3[%c0_10, %c0_11], %42 {strides = array<i32>} : memref<8x128xf32, #tpu.memory_space<vmem>>, vector<8x128xf32>,
    return
  }
  func.func @transform_0(%arg0: i32) -> (i32, i32) {
    %c0_i32 = arith.constant 0 : i32
    %c0_i32_0 = arith.constant 0 : i32
    return %arg0, %c0_i32 : i32, i32
  }
  func.func @transform_1(%arg0: i32) -> (i32, i32) {
    %c0_i32 = arith.constant 0 : i32
    %c0_i32_0 = arith.constant 0 : i32
    return %arg0, %c0_i32 : i32, i32
  }
  func.func @transform_2(%arg0: i32) -> (i32, i32) {
    %c0_i32 = arith.constant 0 : i32
    %c0_i32_0 = arith.constant 0 : i32
    return %arg0, %c0_i32 : i32, i32
  }
  func.func @transform_3(%arg0: i32) -> (i32, i32) {
    %c0_i32 = arith.constant 0 : i32
    %c0_i32_0 = arith.constant 0 : i32
    return %arg0, %c0_i32 : i32, i32
  }
}

</mosaic_0001>

<llo_original>
// kernel: even_linear_grid_maker.1
$region0: #{even_linear_grid_maker.1}
  #allocation0 [shape = 'u32[]', space=smem, size = 0x4, offset = 0x4, fixed_abs, tag = 'smem constant byte address 0x4 - core index']
  #allocation1 [shape = 'u32[144,128]{1,0:T(1,128)}', space=vmem, size = 0x12000, scoped, tag = 'internal scratch']
  %s0 = inlined_call_operand.vmem [shape: f32[8,8], index: 0, kind: input, shape index: {}]
  %s1 = inlined_call_operand.vmem [shape: f32[8,8], index: 1, kind: input, shape index: {}]
  %s2 = inlined_call_operand.vmem [shape: f32[8,128], index: 2, kind: output, shape index: {0}]
  %s3 = inlined_call_operand.vmem [shape: f32[8,128], index: 3, kind: output, shape index: {1}]
  %4 = xla_tuple %s2, %s3
  %s5 = sld [smem:[#allocation0]]
  $region26: #{even_linear_grid_maker.1} parent=0
    _
  %s7 = ssub.s32 1, %s5
  %s8 = scalar_select 0, %s7, %s5
  // Predicated region
  $region2: #{even_linear_grid_maker.1} parent=0 // pred_check
    _
  $region3: #{even_linear_grid_maker.1} parent=0 // pred_check_branch
    %10 = sbr.rel (0) target = $region5
  $region4: #{even_linear_grid_maker.1} parent=0 // pred_region
    _
  $region5: #{even_linear_grid_maker.1} parent=0 // pred_fallthru
    _
  // Predicated region
  $region6: #{even_linear_grid_maker.1} parent=0 // pred_check
    _
  $region7: #{even_linear_grid_maker.1} parent=0 // pred_check_branch
    %12 = sbr.rel (0) target = $region9
  $region8: #{even_linear_grid_maker.1} parent=0 // pred_region
    _
  $region9: #{even_linear_grid_maker.1} parent=0 // pred_fallthru
    _
  %v14 = vlaneseq
  %v15 = vand.u32 %v14, 127
  %v16 = vand.u32 %v15, 15
  %v17 = vadd.s32 %v16, 1
  %v18 = vcvt.s32.f32 %v17
  %v19 = vlaneseq
  %v20 = vshrl.u32 %v19, 7
  %v21 = vshra.s32 %v15, 4
  %vm22 = vcmp.eq.s32.totalorder %v21, %v20
  %v23 = vsel %vm22, 1, 0
  %v24 = vcvt.s32.f32 %v23
  %v25 = vpack.c.bf16 %v24, %v24
  %v26 = vld [vmem:[%s0] sm:$0xff]
  %v27 = vpack.c.bf16 %v26, %v26
  %v28 = vunpack.c.l.bf16 %v27
  %v29 = vsub.f32 %v26, %v28
  %v30 = vpack.c.bf16 %v29, %v29
  %v31 = vunpack.c.l.bf16 %v30
  %v32 = vsub.f32 %v29, %v31
  %v33 = vpack.c.bf16 %v32, %v32
  %vm34 = vcmask 64512
  %v36 = vsel %vm34, %v33, 0
  %vm38 = vcmask 1043456
  %v40 = vsel %vm38, %v25, 0
  %42 = vmatprep.subr.bf16.mxu0 0
  %43 = vmatpush1.bf16.msra.mxu0 %v40
  %44 = vmatprep.subr.bf16.mxu0 0
  %45 = vmatpush1.bf16.msra.mxu0 0
  %46 = vmatprep.subr.bf16.mxu0 0
  %47 = vmatpush1.bf16.msra.mxu0 0
  %48 = vmatprep.subr.bf16.mxu0 0
  %49 = vmatpush1.bf16.msra.mxu0 0
  %50 = vmatprep.subr.bf16.mxu0 0
  %51 = vmatpush1.bf16.msra.mxu0 0
  %52 = vmatprep.subr.bf16.mxu0 0
  %53 = vmatpush1.bf16.msra.mxu0 0
  %54 = vmatprep.subr.bf16.mxu0 0
  %55 = vmatpush1.bf16.msra.mxu0 0
  %56 = vmatprep.subr.bf16.mxu0 0
  %57 = vmatpush1.bf16.msra.mxu0 0
  %58 = vmatprep.subr.bf16.mxu0 0
  %59 = vmatpush1.bf16.msra.mxu0 0
  %60 = vmatprep.subr.bf16.mxu0 0
  %61 = vmatpush1.bf16.msra.mxu0 0
  %62 = vmatprep.subr.bf16.mxu0 0
  %63 = vmatpush1.bf16.msra.mxu0 0
  %64 = vmatprep.subr.bf16.mxu0 0
  %65 = vmatpush1.bf16.msra.mxu0 0
  %66 = vmatprep.subr.bf16.mxu0 0
  %67 = vmatpush1.bf16.msra.mxu0 0
  %68 = vmatprep.subr.bf16.mxu0 0
  %69 = vmatpush1.bf16.msra.mxu0 0
  %70 = vmatprep.subr.bf16.mxu0 0
  %71 = vmatpush1.bf16.msra.mxu0 0
  %72 = vmatprep.subr.bf16.mxu0 0
  %73 = vmatpush1.bf16.msra.mxu0 0
  %74 = vmatprep.mubr.bf16.mxu0 0
  %75 = vmatmul.mubr.bf16.gmra.mrb[0].mxu0 %v36
  %v76 = vpop.f32.mrb[0].mxu0
  %v77 = vadd.f32 0.0, %v76
  %v78 = vpop.f32.mrb[0].mxu0
  %v79 = vpop.f32.mrb[0].mxu0
  %v80 = vpop.f32.mrb[0].mxu0
  %81 = vdwg.mxu0
  %v83 = vsel %vm34, %v30, 0
  %85 = vmatprep.subr.bf16.mxu0 0
  %86 = vmatpush1.bf16.msra.mxu0 %v40
  %87 = vmatprep.subr.bf16.mxu0 0
  %88 = vmatpush1.bf16.msra.mxu0 0
  %89 = vmatprep.subr.bf16.mxu0 0
  %90 = vmatpush1.bf16.msra.mxu0 0
  %91 = vmatprep.subr.bf16.mxu0 0
  %92 = vmatpush1.bf16.msra.mxu0 0
  %93 = vmatprep.subr.bf16.mxu0 0
  %94 = vmatpush1.bf16.msra.mxu0 0
  %95 = vmatprep.subr.bf16.mxu0 0
  %96 = vmatpush1.bf16.msra.mxu0 0
  %97 = vmatprep.subr.bf16.mxu0 0
  %98 = vmatpush1.bf16.msra.mxu0 0
  %99 = vmatprep.subr.bf16.mxu0 0
  %100 = vmatpush1.bf16.msra.mxu0 0
  %101 = vmatprep.subr.bf16.mxu0 0
  %102 = vmatpush1.bf16.msra.mxu0 0
  %103 = vmatprep.subr.bf16.mxu0 0
  %104 = vmatpush1.bf16.msra.mxu0 0
  %105 = vmatprep.subr.bf16.mxu0 0
  %106 = vmatpush1.bf16.msra.mxu0 0
  %107 = vmatprep.subr.bf16.mxu0 0
  %108 = vmatpush1.bf16.msra.mxu0 0
  %109 = vmatprep.subr.bf16.mxu0 0
  %110 = vmatpush1.bf16.msra.mxu0 0
  %111 = vmatprep.subr.bf16.mxu0 0
  %112 = vmatpush1.bf16.msra.mxu0 0
  %113 = vmatprep.subr.bf16.mxu0 0
  %114 = vmatpush1.bf16.msra.mxu0 0
  %115 = vmatprep.subr.bf16.mxu0 0
  %116 = vmatpush1.bf16.msra.mxu0 0
  %117 = vmatprep.mubr.bf16.mxu0 0
  %118 = vmatmul.mubr.bf16.gmra.mrb[0].mxu0 %v83
  %v119 = vpop.f32.mrb[0].mxu0
  %v120 = vadd.f32 %v77, %v119
  %v121 = vpop.f32.mrb[0].mxu0
  %v122 = vpop.f32.mrb[0].mxu0
  %v123 = vpop.f32.mrb[0].mxu0
  %124 = vdwg.mxu0
  %v126 = vsel %vm34, %v27, 0
  %128 = vmatprep.subr.bf16.mxu0 0
  %129 = vmatpush1.bf16.msra.mxu0 %v40
  %130 = vmatprep.subr.bf16.mxu0 0
  %131 = vmatpush1.bf16.msra.mxu0 0
  %132 = vmatprep.subr.bf16.mxu0 0
  %133 = vmatpush1.bf16.msra.mxu0 0
  %134 = vmatprep.subr.bf16.mxu0 0
  %135 = vmatpush1.bf16.msra.mxu0 0
  %136 = vmatprep.subr.bf16.mxu0 0
  %137 = vmatpush1.bf16.msra.mxu0 0
  %138 = vmatprep.subr.bf16.mxu0 0
  %139 = vmatpush1.bf16.msra.mxu0 0
  %140 = vmatprep.subr.bf16.mxu0 0
  %141 = vmatpush1.bf16.msra.mxu0 0
  %142 = vmatprep.subr.bf16.mxu0 0
  %143 = vmatpush1.bf16.msra.mxu0 0
  %144 = vmatprep.subr.bf16.mxu0 0
  %145 = vmatpush1.bf16.msra.mxu0 0
  %146 = vmatprep.subr.bf16.mxu0 0
  %147 = vmatpush1.bf16.msra.mxu0 0
  %148 = vmatprep.subr.bf16.mxu0 0
  %149 = vmatpush1.bf16.msra.mxu0 0
  %150 = vmatprep.subr.bf16.mxu0 0
  %151 = vmatpush1.bf16.msra.mxu0 0
  %152 = vmatprep.subr.bf16.mxu0 0
  %153 = vmatpush1.bf16.msra.mxu0 0
  %154 = vmatprep.subr.bf16.mxu0 0
  %155 = vmatpush1.bf16.msra.mxu0 0
  %156 = vmatprep.subr.bf16.mxu0 0
  %157 = vmatpush1.bf16.msra.mxu0 0
  %158 = vmatprep.subr.bf16.mxu0 0
  %159 = vmatpush1.bf16.msra.mxu0 0
  %160 = vmatprep.mubr.bf16.mxu0 0
  %161 = vmatmul.mubr.bf16.gmra.mrb[0].mxu0 %v126
  %v162 = vpop.f32.mrb[0].mxu0
  %v163 = vadd.f32 %v120, %v162
  %v164 = vpop.f32.mrb[0].mxu0
  %v165 = vpop.f32.mrb[0].mxu0
  %v166 = vpop.f32.mrb[0].mxu0
  %167 = vdwg.mxu0
  %v168 = vld [vmem:[%s1] sm:$0xff]
  %v169 = vpack.c.bf16 %v168, %v168
  %v170 = vunpack.c.l.bf16 %v169
  %v171 = vsub.f32 %v168, %v170
  %v172 = vpack.c.bf16 %v171, %v171
  %v173 = vunpack.c.l.bf16 %v172
  %v174 = vsub.f32 %v171, %v173
  %v175 = vpack.c.bf16 %v174, %v174
  %v177 = vsel %vm34, %v175, 0
  %179 = vmatprep.subr.bf16.mxu0 0
  %180 = vmatpush1.bf16.msra.mxu0 %v40
  %181 = vmatprep.subr.bf16.mxu0 0
  %182 = vmatpush1.bf16.msra.mxu0 0
  %183 = vmatprep.subr.bf16.mxu0 0
  %184 = vmatpush1.bf16.msra.mxu0 0
  %185 = vmatprep.subr.bf16.mxu0 0
  %186 = vmatpush1.bf16.msra.mxu0 0
  %187 = vmatprep.subr.bf16.mxu0 0
  %188 = vmatpush1.bf16.msra.mxu0 0
  %189 = vmatprep.subr.bf16.mxu0 0
  %190 = vmatpush1.bf16.msra.mxu0 0
  %191 = vmatprep.subr.bf16.mxu0 0
  %192 = vmatpush1.bf16.msra.mxu0 0
  %193 = vmatprep.subr.bf16.mxu0 0
  %194 = vmatpush1.bf16.msra.mxu0 0
  %195 = vmatprep.subr.bf16.mxu0 0
  %196 = vmatpush1.bf16.msra.mxu0 0
  %197 = vmatprep.subr.bf16.mxu0 0
  %198 = vmatpush1.bf16.msra.mxu0 0
  %199 = vmatprep.subr.bf16.mxu0 0
  %200 = vmatpush1.bf16.msra.mxu0 0
  %201 = vmatprep.subr.bf16.mxu0 0
  %202 = vmatpush1.bf16.msra.mxu0 0
  %203 = vmatprep.subr.bf16.mxu0 0
  %204 = vmatpush1.bf16.msra.mxu0 0
  %205 = vmatprep.subr.bf16.mxu0 0
  %206 = vmatpush1.bf16.msra.mxu0 0
  %207 = vmatprep.subr.bf16.mxu0 0
  %208 = vmatpush1.bf16.msra.mxu0 0
  %209 = vmatprep.subr.bf16.mxu0 0
  %210 = vmatpush1.bf16.msra.mxu0 0
  %211 = vmatprep.mubr.bf16.mxu0 0
  %212 = vmatmul.mubr.bf16.gmra.mrb[0].mxu0 %v177
  %v213 = vpop.f32.mrb[0].mxu0
  %v214 = vadd.f32 0.0, %v213
  %v215 = vpop.f32.mrb[0].mxu0
  %v216 = vpop.f32.mrb[0].mxu0
  %v217 = vpop.f32.mrb[0].mxu0
  %218 = vdwg.mxu0
  %v220 = vsel %vm34, %v172, 0
  %222 = vmatprep.subr.bf16.mxu0 0
  %223 = vmatpush1.bf16.msra.mxu0 %v40
  %224 = vmatprep.subr.bf16.mxu0 0
  %225 = vmatpush1.bf16.msra.mxu0 0
  %226 = vmatprep.subr.bf16.mxu0 0
  %227 = vmatpush1.bf16.msra.mxu0 0
  %228 = vmatprep.subr.bf16.mxu0 0
  %229 = vmatpush1.bf16.msra.mxu0 0
  %230 = vmatprep.subr.bf16.mxu0 0
  %231 = vmatpush1.bf16.msra.mxu0 0
  %232 = vmatprep.subr.bf16.mxu0 0
  %233 = vmatpush1.bf16.msra.mxu0 0
  %234 = vmatprep.subr.bf16.mxu0 0
  %235 = vmatpush1.bf16.msra.mxu0 0
  %236 = vmatprep.subr.bf16.mxu0 0
  %237 = vmatpush1.bf16.msra.mxu0 0
  %238 = vmatprep.subr.bf16.mxu0 0
  %239 = vmatpush1.bf16.msra.mxu0 0
  %240 = vmatprep.subr.bf16.mxu0 0
  %241 = vmatpush1.bf16.msra.mxu0 0
  %242 = vmatprep.subr.bf16.mxu0 0
  %243 = vmatpush1.bf16.msra.mxu0 0
  %244 = vmatprep.subr.bf16.mxu0 0
  %245 = vmatpush1.bf16.msra.mxu0 0
  %246 = vmatprep.subr.bf16.mxu0 0
  %247 = vmatpush1.bf16.msra.mxu0 0
  %248 = vmatprep.subr.bf16.mxu0 0
  %249 = vmatpush1.bf16.msra.mxu0 0
  %250 = vmatprep.subr.bf16.mxu0 0
  %251 = vmatpush1.bf16.msra.mxu0 0
  %252 = vmatprep.subr.bf16.mxu0 0
  %253 = vmatpush1.bf16.msra.mxu0 0
  %254 = vmatprep.mubr.bf16.mxu0 0
  %255 = vmatmul.mubr.bf16.gmra.mrb[0].mxu0 %v220
  %v256 = vpop.f32.mrb[0].mxu0
  %v257 = vadd.f32 %v214, %v256
  %v258 = vpop.f32.mrb[0].mxu0
  %v259 = vpop.f32.mrb[0].mxu0
  %v260 = vpop.f32.mrb[0].mxu0
  %261 = vdwg.mxu0
  %v263 = vsel %vm34, %v169, 0
  %265 = vmatprep.subr.bf16.mxu0 0
  %266 = vmatpush1.bf16.msra.mxu0 %v40
  %267 = vmatprep.subr.bf16.mxu0 0
  %268 = vmatpush1.bf16.msra.mxu0 0
  %269 = vmatprep.subr.bf16.mxu0 0
  %270 = vmatpush1.bf16.msra.mxu0 0
  %271 = vmatprep.subr.bf16.mxu0 0
  %272 = vmatpush1.bf16.msra.mxu0 0
  %273 = vmatprep.subr.bf16.mxu0 0
  %274 = vmatpush1.bf16.msra.mxu0 0
  %275 = vmatprep.subr.bf16.mxu0 0
  %276 = vmatpush1.bf16.msra.mxu0 0
  %277 = vmatprep.subr.bf16.mxu0 0
  %278 = vmatpush1.bf16.msra.mxu0 0
  %279 = vmatprep.subr.bf16.mxu0 0
  %280 = vmatpush1.bf16.msra.mxu0 0
  %281 = vmatprep.subr.bf16.mxu0 0
  %282 = vmatpush1.bf16.msra.mxu0 0
  %283 = vmatprep.subr.bf16.mxu0 0
  %284 = vmatpush1.bf16.msra.mxu0 0
  %285 = vmatprep.subr.bf16.mxu0 0
  %286 = vmatpush1.bf16.msra.mxu0 0
  %287 = vmatprep.subr.bf16.mxu0 0
  %288 = vmatpush1.bf16.msra.mxu0 0
  %289 = vmatprep.subr.bf16.mxu0 0
  %290 = vmatpush1.bf16.msra.mxu0 0
  %291 = vmatprep.subr.bf16.mxu0 0
  %292 = vmatpush1.bf16.msra.mxu0 0
  %293 = vmatprep.subr.bf16.mxu0 0
  %294 = vmatpush1.bf16.msra.mxu0 0
  %295 = vmatprep.subr.bf16.mxu0 0
  %296 = vmatpush1.bf16.msra.mxu0 0
  %297 = vmatprep.mubr.bf16.mxu0 0
  %298 = vmatmul.mubr.bf16.gmra.mrb[0].mxu0 %v263
  %v299 = vpop.f32.mrb[0].mxu0
  %v300 = vadd.f32 %v257, %v299
  %v301 = vpop.f32.mrb[0].mxu0
  %v302 = vpop.f32.mrb[0].mxu0
  %v303 = vpop.f32.mrb[0].mxu0
  %304 = vdwg.mxu0
  %v305 = vmul.f32 %v163, %v18
  %306 = vst [vmem:[%s3] sm:$0xff] %v305
  %v307 = vadd.f32 %v300, %v305
  %308 = vst [vmem:[%s2] sm:$0xff] %v307
  // Predicated region
  $region10: #{even_linear_grid_maker.1} parent=0 // pred_check
    _
  $region11: #{even_linear_grid_maker.1} parent=0 // pred_check_branch
    %310 = sbr.rel (0) target = $region13
  $region12: #{even_linear_grid_maker.1} parent=0 // pred_region
    _
  $region13: #{even_linear_grid_maker.1} parent=0 // pred_fallthru
    _
  // Predicated region
  $region14: #{even_linear_grid_maker.1} parent=0 // pred_check
    _
  $region15: #{even_linear_grid_maker.1} parent=0 // pred_check_branch
    %312 = sbr.rel (0) target = $region17
  $region16: #{even_linear_grid_maker.1} parent=0 // pred_region
    _
  $region17: #{even_linear_grid_maker.1} parent=0 // pred_fallthru
    _
  // Predicated region
  $region18: #{even_linear_grid_maker.1} parent=0 // pred_check
    _
  $region19: #{even_linear_grid_maker.1} parent=0 // pred_check_branch
    %314 = sbr.rel (0) target = $region21
  $region20: #{even_linear_grid_maker.1} parent=0 // pred_region
    _
  $region21: #{even_linear_grid_maker.1} parent=0 // pred_fallthru
    _
  // Predicated region
  $region22: #{even_linear_grid_maker.1} parent=0 // pred_check
    _
  $region23: #{even_linear_grid_maker.1} parent=0 // pred_check_branch
    %316 = sbr.rel (0) target = $region25
  $region24: #{even_linear_grid_maker.1} parent=0 // pred_region
    _
  $region25: #{even_linear_grid_maker.1} parent=0 // pred_fallthru
    _

</llo_original>
